<compile_context>
chip_gen: v5e
topology: v5e:2x2
jax: 0.10.0
libtpu: 0.0.40
codegen_flags: <defaults>
</compile_context>

<pallas_src>
import math
import functools

import jax
import jax.numpy as jnp
from jax.experimental import pallas as pl
from jax.experimental.pallas import tpu as pltpu


OUT_PAD = 128  # lane-dense output width (actual output is 2 columns)


# ----------------------------- Pallas kernel ------------------------------- #

def _leaky_relu(x, slope=0.2):
    return jnp.where(x >= 0, x, slope * x)


def _silu(x):
    # x * sigmoid(x); approximate reciprocal lowers to the EUP slot.
    return x * pl.reciprocal(1.0 + jnp.exp(-x), approx=True)


def g_gaussian_kernel(temb0_ref, xz_ref,
                      wstack_ref, bstack_ref, wxz_ref, wfold_ref, tail_ref,
                      out_ref):
    f32 = jnp.float32
    bf16 = jnp.bfloat16
    temb0 = temb0_ref[...]           # (TB, t_emb_dim) sinusoidal embedding, bf16
    xz = xz_ref[...]                 # (TB, 2 + nz) f32 -- cols [0:2]=xt, [2:]=z

    # --- TimestepEmbedding.main: Linear -> LeakyReLU(0.2) -> Linear ----------
    h = jnp.dot(temb0, wstack_ref[0], preferred_element_type=f32) + bstack_ref[0:1, :]
    h = _leaky_relu(h)
    h = jnp.dot(h.astype(bf16), wstack_ref[1], preferred_element_type=f32) + bstack_ref[1:2, :]
    temb = _leaky_relu(h)            # outer self.act(...) from G_guassian.forward

    # --- decode[0]: Linear(nz*2 + t_emb_dim, ch) on cat([xt, temb, z]) -------
    # temb part is a real (128x128) MXU matmul; xt/z parts (K=2 each) are
    # broadcast FMAs on the VPU in f32 (hide under the matmul's VALU slack).
    d = jnp.dot(temb.astype(bf16), wstack_ref[2], preferred_element_type=f32) + bstack_ref[2:3, :]
    for c in range(xz.shape[1]):     # static unroll: 2 + nz FMAs
        d = d + xz[:, c:c + 1] * wxz_ref[c:c + 1, :]
    d = _silu(d)

    # --- decode[2], decode[4]: Linear(ch,ch) + SiLU --------------------------
    d = _silu(jnp.dot(d.astype(bf16), wstack_ref[3], preferred_element_type=f32) + bstack_ref[3:4, :])
    d = _silu(jnp.dot(d.astype(bf16), wstack_ref[4], preferred_element_type=f32) + bstack_ref[4:5, :])

    # --- folded (decode[6] ∘ out): out = d @ (Wd4 @ Wo[:2]) + xt @ Wo[2:] + b_fold
    # All tail weights are zero-padded to 128 lanes -> unmasked lane-dense vst;
    # columns >= 2 of the result are exact zeros.
    out = jnp.dot(d.astype(bf16), wfold_ref[...], preferred_element_type=f32)
    out = out + xz[:, 0:1] * tail_ref[0:1, :] + xz[:, 1:2] * tail_ref[1:2, :]
    out_ref[...] = out + tail_ref[2:3, :]


# ------------------------------ JAX glue ------------------------------------ #

def get_timestep_embedding(timesteps, embedding_dim):
    """Standard DDPM sinusoidal embedding (matches the DDGAN repo helper)."""
    half_dim = embedding_dim // 2
    emb = math.log(10000.0) / (half_dim - 1)
    emb = jnp.exp(jnp.arange(half_dim, dtype=jnp.float32) * -emb)
    emb = timesteps.astype(jnp.float32)[:, None] * emb[None, :]
    emb = jnp.concatenate([jnp.sin(emb), jnp.cos(emb)], axis=1)
    if embedding_dim % 2 == 1:
        emb = jnp.pad(emb, ((0, 0), (0, 1)))
    return emb


def _linear_init(key, fan_in, fan_out):
    """Deterministic init mimicking PyTorch nn.Linear default (U(-k, k), k=1/sqrt(fan_in))."""
    kw, kb = jax.random.split(key)
    bound = 1.0 / math.sqrt(fan_in)
    w = jax.random.uniform(kw, (fan_in, fan_out), jnp.float32, -bound, bound)
    b = jax.random.uniform(kb, (1, fan_out), jnp.float32, -bound, bound)
    return w, b


def init_params(key, nz=2, t_emb_dim=128, ch=100):
    keys = jax.random.split(key, 7)
    p = {}
    p["wt1"], p["bt1"] = _linear_init(keys[0], t_emb_dim, t_emb_dim)
    p["wt2"], p["bt2"] = _linear_init(keys[1], t_emb_dim, t_emb_dim)
    p["wd1"], p["bd1"] = _linear_init(keys[2], nz * 2 + t_emb_dim, ch)
    p["wd2"], p["bd2"] = _linear_init(keys[3], ch, ch)
    p["wd3"], p["bd3"] = _linear_init(keys[4], ch, ch)
    p["wd4"], p["bd4"] = _linear_init(keys[5], ch, 2)
    p["wo"], p["bo"] = _linear_init(keys[6], 4, 2)
    return p


def _pad_to(x, rows, cols):
    return jnp.pad(x, ((0, rows - x.shape[0]), (0, cols - x.shape[1])))


def pack_params(params, nz=2, t_emb_dim=128, ch=100):
    """Pack/pad/fold/cast the ~20 Linear weights into 5 kernel-ready blobs.

    Done ONCE per parameter set (hoisted out of the per-call forward)."""
    assert t_emb_dim % 128 == 0 and ch <= t_emb_dim
    ch_pad = t_emb_dim

    # split decode[0] weight along its input dim: [xt (2) | temb | z (nz)]
    wd1 = params["wd1"]
    wd1x = wd1[:2]
    wd1t = wd1[2:2 + t_emb_dim]
    wd1z = wd1[2 + t_emb_dim:]

    # pack the five 128x128 MXU weights (zero-padded ch -> ch_pad) as bf16
    w_stack = jnp.stack([
        params["wt1"], params["wt2"],
        _pad_to(wd1t, t_emb_dim, ch_pad),
        _pad_to(params["wd2"], ch_pad, ch_pad),
        _pad_to(params["wd3"], ch_pad, ch_pad),
    ]).astype(jnp.bfloat16)                                         # (5, 128, 128)
    b_stack = jnp.concatenate([
        params["bt1"], params["bt2"],
        _pad_to(params["bd1"], 1, ch_pad),
        _pad_to(params["bd2"], 1, ch_pad),
        _pad_to(params["bd3"], 1, ch_pad),
    ], axis=0).astype(jnp.float32)                                  # (5, 128)

    # xt/z rows of decode[0] (K=2 contractions, handled as f32 VPU FMAs)
    w_xz = _pad_to(jnp.concatenate([wd1x, wd1z], axis=0), 2 + nz, ch_pad)  # (2+nz, 128)

    # fold decode[3] (ch->2) with out (4->2):
    #   out = d @ (Wd4 @ Wo[:2]) + xt @ Wo[2:] + (bd4 @ Wo[:2] + bo)
    wo = params["wo"]
    w_fold = _pad_to(params["wd4"], ch_pad, 2) @ wo[:2]             # (128, 2)
    b_fold = params["bd4"] @ wo[:2] + params["bo"]                  # (1, 2)
    # lane-dense zero-padding of the tail to OUT_PAD output lanes
    w_fold = _pad_to(w_fold, ch_pad, OUT_PAD).astype(jnp.bfloat16)  # (128, 128)
    tail = _pad_to(jnp.concatenate([wo[2:], b_fold], axis=0), 3, OUT_PAD)  # (3, 128) f32

    return {"w_stack": w_stack, "b_stack": b_stack, "w_xz": w_xz,
            "w_fold": w_fold, "tail": tail}


def _choose_tb(B):
    """Batch tile: >=2 grid steps when possible (v7x dual TC), multiple of 8,
    capped at 1024 to amortize per-step overhead with bounded VMEM."""
    if B <= 8:
        return B
    tb = -(-B // 2)          # ceil(B/2) -> at least 2 steps
    tb = -(-tb // 8) * 8     # round up to sublane multiple
    return min(tb, 1024)


@functools.partial(jax.jit, static_argnames=("t_emb_dim",))
def g_gaussian_forward(packed, xt, t, z, t_emb_dim=128):
    B = xt.shape[0]
    nz = z.shape[1]
    ch_pad = packed["w_stack"].shape[2]

    # cheap glue outside the kernel (sinusoidal embedding + concat)
    temb0 = get_timestep_embedding(t * 1000.0, t_emb_dim).astype(jnp.bfloat16)  # (B, 128)
    xz = jnp.concatenate([xt, z], axis=1).astype(jnp.float32)                    # (B, 2+nz)

    TB = _choose_tb(B)
    grid = (pl.cdiv(B, TB),)

    const2 = lambda i: (0, 0)
    grid_spec = pltpu.PrefetchScalarGridSpec(
        num_scalar_prefetch=0,
        grid=grid,
        in_specs=[
            pl.BlockSpec((TB, t_emb_dim), lambda i: (i, 0)),            # temb0 (bf16)
            pl.BlockSpec((TB, 2 + nz), lambda i: (i, 0)),               # xz (f32)
            pl.BlockSpec((5, t_emb_dim, ch_pad), lambda i: (0, 0, 0)),  # w_stack (bf16)
            pl.BlockSpec((5, ch_pad), const2),                          # b_stack (f32)
            pl.BlockSpec((2 + nz, ch_pad), const2),                     # w_xz (f32)
            pl.BlockSpec((ch_pad, OUT_PAD), const2),                    # w_fold (bf16)
            pl.BlockSpec((3, OUT_PAD), const2),                         # tail (f32)
        ],
        out_specs=pl.BlockSpec((TB, OUT_PAD), lambda i: (i, 0)),
    )

    out_pad = pl.pallas_call(
        g_gaussian_kernel,
        out_shape=jax.ShapeDtypeStruct((B, OUT_PAD), jnp.float32),
        grid_spec=grid_spec,
        compiler_params=pltpu.CompilerParams(
            dimension_semantics=("parallel",),        # shards batch across v7x's 2 TCs
            vmem_limit_bytes=32 * 1024 * 1024,
        ),
    )(temb0, xz, packed["w_stack"], packed["b_stack"], packed["w_xz"],
      packed["w_fold"], packed["tail"])

    return out_pad[:, :2]


# ---------------------- pure-JAX reference (for checking) ------------------- #

def reference_forward(params, xt, t, z, t_emb_dim=128):
    def leaky(x): return jnp.where(x >= 0, x, 0.2 * x)
    def silu(x): return x * jax.nn.sigmoid(x)
    temb = get_timestep_embedding(t * 1000.0, t_emb_dim)
    temb = leaky(temb @ params["wt1"] + params["bt1"])
    temb = leaky(temb @ params["wt2"] + params["bt2"])
    inp = jnp.concatenate([xt, temb, z], axis=1)
    h = silu(inp @ params["wd1"] + params["bd1"])
    h = silu(h @ params["wd2"] + params["bd2"])
    h = silu(h @ params["wd3"] + params["bd3"])
    h = h @ params["wd4"] + params["bd4"]
    out = jnp.concatenate([h, xt], axis=1)
    return out @ params["wo"] + params["bo"]


# ---------------------------------- main ------------------------------------ #

if __name__ == "__main__":
    B, nz, t_emb_dim, ch = 8, 2, 128, 100

    key = jax.random.PRNGKey(0)
    kp, kx, kt, kz = jax.random.split(key, 4)
    params = init_params(kp, nz=nz, t_emb_dim=t_emb_dim, ch=ch)
    packed = pack_params(params, nz=nz, t_emb_dim=t_emb_dim, ch=ch)   # once per param set

    xt = jax.random.normal(kx, (B, 2), jnp.float32)
    t = jax.random.uniform(kt, (B,), jnp.float32)          # continuous time in [0, 1)
    z = jax.random.normal(kz, (B, nz), jnp.float32)

    out = g_gaussian_forward(packed, xt, t, z, t_emb_dim=t_emb_dim)
    out = jax.block_until_ready(out)

    ref = reference_forward(params, xt, t, z, t_emb_dim=t_emb_dim)
    assert out.shape == (B, 2)
    # tolerance accounts for bf16 MXU operands + pl.reciprocal(approx=True) SiLU
    assert jnp.allclose(out, ref, atol=2e-2, rtol=2e-2), (out, ref)

    print("KERNEL_OK")
</pallas_src>

<mosaic_0001>
module attributes {stable_mosaic.version = 11 : i64} {
  func.func @g_gaussian_kernel(%arg0: i32, %arg1: memref<8x128xbf16, #tpu.memory_space<vmem>>, %arg2: memref<8x4xf32, #tpu.memory_space<vmem>>, %arg3: memref<5x128x128xbf16, #tpu.memory_space<vmem>>, %arg4: memref<5x128xf32, #tpu.memory_space<vmem>>, %arg5: memref<4x128xf32, #tpu.memory_space<vmem>>, %arg6: memref<128x128xbf16, #tpu.memory_space<vmem>>, %arg7: memref<3x128xf32, #tpu.memory_space<vmem>>, %arg8: memref<8x128xf32, #tpu.memory_space<vmem>>) attributes {dimension_semantics = [#tpu.dimension_semantics<parallel>], iteration_bounds = array<i64: 1>, scalar_prefetch = 0 : i64, scratch_operands = 0 : i64, tpu.core_type = #tpu.core_type<tc>, window_params = [{transform_indices = @transform_0, window_bounds = array<i64: 8, 128>}, {transform_indices = @transform_1, window_bounds = array<i64: 8, 4>}, {pipeline_mode = #tpu.pipeline_mode<synchronous>, transform_indices = @transform_2, window_bounds = array<i64: 5, 128, 128>}, {pipeline_mode = #tpu.pipeline_mode<synchronous>, transform_indices = @transform_3, window_bounds = array<i64: 5, 128>}, {pipeline_mode = #tpu.pipeline_mode<synchronous>, transform_indices = @transform_4, window_bounds = array<i64: 4, 128>}, {pipeline_mode = #tpu.pipeline_mode<synchronous>, transform_indices = @transform_5, window_bounds = array<i64: 128, 128>}, {pipeline_mode = #tpu.pipeline_mode<synchronous>, transform_indices = @transform_6, window_bounds = array<i64: 3, 128>}, {transform_indices = @transform_7, window_bounds = array<i64: 8, 128>}]} {
    %c0 = arith.constant 0 : index
    %c0_0 = arith.constant 0 : index
    %0 = vector.load %arg1[%c0, %c0_0] : memref<8x128xbf16, #tpu.memory_space<vmem>>, vector<8x128xbf16>
    %c0_1 = arith.constant 0 : index
    %c0_2 = arith.constant 0 : index
    %1 = vector.load %arg2[%c0_1, %c0_2] : memref<8x4xf32, #tpu.memory_space<vmem>>, vector<8x4xf32>
    %c0_3 = arith.constant 0 : index
    %c0_4 = arith.constant 0 : index
    %c0_5 = arith.constant 0 : index
    %2 = vector.load %arg3[%c0_3, %c0_4, %c0_5] : memref<5x128x128xbf16, #tpu.memory_space<vmem>>, vector<1x128x128xbf16>
    %3 = vector.shape_cast %2 : vector<1x128x128xbf16> to vector<128x128xbf16>
    %cst = arith.constant dense<0.000000e+00> : vector<8x128xf32>
    %4 = tpu.matmul %0, %3, %cst {dimension_numbers = #tpu.dot_dimension_numbers<[1], [0], [0], [1], [0, 0, 1, 1], [], []>} : vector<8x128xbf16>, vector<128x128xbf16>, vector<8x128xf32> -> vector<8x128xf32>
    %c0_6 = arith.constant 0 : index
    %c0_7 = arith.constant 0 : index
    %5 = vector.load %arg4[%c0_6, %c0_7] : memref<5x128xf32, #tpu.memory_space<vmem>>, vector<1x128xf32>
    %6 = vector.broadcast %5 : vector<1x128xf32> to vector<8x128xf32>
    %7 = arith.addf %4, %6 : vector<8x128xf32>
    %cst_8 = arith.constant 0.000000e+00 : f32
    %8 = vector.broadcast %cst_8 : f32 to vector<8x128xf32>
    %9 = arith.cmpf oge, %7, %8 : vector<8x128xf32>
    %cst_9 = arith.constant 2.000000e-01 : f32
    %10 = vector.broadcast %cst_9 : f32 to vector<8x128xf32>
    %11 = arith.mulf %10, %7 : vector<8x128xf32>
    %12 = arith.select %9, %7, %11 : vector<8x128xi1>, vector<8x128xf32>
    %13 = arith.truncf %12 : vector<8x128xf32> to vector<8x128xbf16>
    %c1 = arith.constant 1 : index
    %c0_10 = arith.constant 0 : index
    %c0_11 = arith.constant 0 : index
    %14 = vector.load %arg3[%c1, %c0_10, %c0_11] : memref<5x128x128xbf16, #tpu.memory_space<vmem>>, vector<1x128x128xbf16>
    %15 = vector.shape_cast %14 : vector<1x128x128xbf16> to vector<128x128xbf16>
    %cst_12 = arith.constant dense<0.000000e+00> : vector<8x128xf32>
    %16 = tpu.matmul %13, %15, %cst_12 {dimension_numbers = #tpu.dot_dimension_numbers<[1], [0], [0], [1], [0, 0, 1, 1], [], []>} : vector<8x128xbf16>, vector<128x128xbf16>, vector<8x128xf32> -> vector<8x128xf32>
    %c1_13 = arith.constant 1 : index
    %c0_14 = arith.constant 0 : index
    %17 = vector.load %arg4[%c1_13, %c0_14] : memref<5x128xf32, #tpu.memory_space<vmem>>, vector<1x128xf32>
    %18 = vector.broadcast %17 : vector<1x128xf32> to vector<8x128xf32>
    %19 = arith.addf %16, %18 : vector<8x128xf32>
    %cst_15 = arith.constant 0.000000e+00 : f32
    %20 = vector.broadcast %cst_15 : f32 to vector<8x128xf32>
    %21 = arith.cmpf oge, %19, %20 : vector<8x128xf32>
    %cst_16 = arith.constant 2.000000e-01 : f32
    %22 = vector.broadcast %cst_16 : f32 to vector<8x128xf32>
    %23 = arith.mulf %22, %19 : vector<8x128xf32>
    %24 = arith.select %21, %19, %23 : vector<8x128xi1>, vector<8x128xf32>
    %25 = arith.truncf %24 : vector<8x128xf32> to vector<8x128xbf16>
    %c2 = arith.constant 2 : index
    %c0_17 = arith.constant 0 : index
    %c0_18 = arith.constant 0 : index
    %26 = vector.load %arg3[%c2, %c0_17, %c0_18] : memref<5x128x128xbf16, #tpu.memory_space<vmem>>, vector<1x128x128xbf16>
    %27 = vector.shape_cast %26 : vector<1x128x128xbf16> to vector<128x128xbf16>
    %cst_19 = arith.constant dense<0.000000e+00> : vector<8x128xf32>
    %28 = tpu.matmul %25, %27, %cst_19 {dimension_numbers = #tpu.dot_dimension_numbers<[1], [0], [0], [1], [0, 0, 1, 1], [], []>} : vector<8x128xbf16>, vector<128x128xbf16>, vector<8x128xf32> -> vector<8x128xf32>
    %c2_20 = arith.constant 2 : index
    %c0_21 = arith.constant 0 : index
    %29 = vector.load %arg4[%c2_20, %c0_21] : memref<5x128xf32, #tpu.memory_space<vmem>>, vector<1x128xf32>
    %30 = vector.broadcast %29 : vector<1x128xf32> to vector<8x128xf32>
    %31 = arith.addf %28, %30 : vector<8x128xf32>
    %32 = vector.extract_strided_slice %1 {offsets = [0, 0], sizes = [8, 1], strides = [1, 1]} : vector<8x4xf32> to vector<8x1xf32>
    %c0_22 = arith.constant 0 : index
    %c0_23 = arith.constant 0 : index
    %33 = vector.load %arg5[%c0_22, %c0_23] : memref<4x128xf32, #tpu.memory_space<vmem>>, vector<1x128xf32>
    %34 = vector.broadcast %32 : vector<8x1xf32> to vector<8x128xf32>
    %35 = vector.broadcast %33 : vector<1x128xf32> to vector<8x128xf32>
    %36 = arith.mulf %34, %35 : vector<8x128xf32>
    %37 = arith.addf %31, %36 : vector<8x128xf32>
    %38 = vector.extract_strided_slice %1 {offsets = [0, 1], sizes = [8, 1], strides = [1, 1]} : vector<8x4xf32> to vector<8x1xf32>
    %c1_24 = arith.constant 1 : index
    %c0_25 = arith.constant 0 : index
    %39 = vector.load %arg5[%c1_24, %c0_25] : memref<4x128xf32, #tpu.memory_space<vmem>>, vector<1x128xf32>
    %40 = vector.broadcast %38 : vector<8x1xf32> to vector<8x128xf32>
    %41 = vector.broadcast %39 : vector<1x128xf32> to vector<8x128xf32>
    %42 = arith.mulf %40, %41 : vector<8x128xf32>
    %43 = arith.addf %37, %42 : vector<8x128xf32>
    %44 = vector.extract_strided_slice %1 {offsets = [0, 2], sizes = [8, 1], strides = [1, 1]} : vector<8x4xf32> to vector<8x1xf32>
    %c2_26 = arith.constant 2 : index
    %c0_27 = arith.constant 0 : index
    %45 = vector.load %arg5[%c2_26, %c0_27] : memref<4x128xf32, #tpu.memory_space<vmem>>, vector<1x128xf32>
    %46 = vector.broadcast %44 : vector<8x1xf32> to vector<8x128xf32>
    %47 = vector.broadcast %45 : vector<1x128xf32> to vector<8x128xf32>
    %48 = arith.mulf %46, %47 : vector<8x128xf32>
    %49 = arith.addf %43, %48 : vector<8x128xf32>
    %50 = vector.extract_strided_slice %1 {offsets = [0, 3], sizes = [8, 1], strides = [1, 1]} : vector<8x4xf32> to vector<8x1xf32>
    %c3 = arith.constant 3 : index
    %c0_28 = arith.constant 0 : index
    %51 = vector.load %arg5[%c3, %c0_28] : memref<4x128xf32, #tpu.memory_space<vmem>>, vector<1x128xf32>
    %52 = vector.broadcast %50 : vector<8x1xf32> to vector<8x128xf32>
    %53 = vector.broadcast %51 : vector<1x128xf32> to vector<8x128xf32>
    %54 = arith.mulf %52, %53 : vector<8x128xf32>
    %55 = arith.addf %49, %54 : vector<8x128xf32>
    %cst_29 = arith.constant 0.000000e+00 : f32
    %56 = vector.broadcast %cst_29 : f32 to vector<8x128xf32>
    %57 = arith.subf %56, %55 : vector<8x128xf32>
    %58 = math.exp %57 : vector<8x128xf32>
    %cst_30 = arith.constant 1.000000e+00 : f32
    %59 = vector.broadcast %cst_30 : f32 to vector<8x128xf32>
    %60 = arith.addf %59, %58 : vector<8x128xf32>
    %61 = tpu.reciprocal %60 {approx = true} : vector<8x128xf32> -> vector<8x128xf32>
    %62 = arith.mulf %55, %61 : vector<8x128xf32>
    %63 = arith.truncf %62 : vector<8x128xf32> to vector<8x128xbf16>
    %c3_31 = arith.constant 3 : index
    %c0_32 = arith.constant 0 : index
    %c0_33 = arith.constant 0 : index
    %64 = vector.load %arg3[%c3_31, %c0_32, %c0_33] : memref<5x128x128xbf16, #tpu.memory_space<vmem>>, vector<1x128x128xbf16>
    %65 = vector.shape_cast %64 : vector<1x128x128xbf16> to vector<128x128xbf16>
    %cst_34 = arith.constant dense<0.000000e+00> : vector<8x128xf32>
    %66 = tpu.matmul %63, %65, %cst_34 {dimension_numbers = #tpu.dot_dimension_numbers<[1], [0], [0], [1], [0, 0, 1, 1], [], []>} : vector<8x128xbf16>, vector<128x128xbf16>, vector<8x128xf32> -> vector<8x128xf32>
    %c3_35 = arith.constant 3 : index
    %c0_36 = arith.constant 0 : index
    %67 = vector.load %arg4[%c3_35, %c0_36] : memref<5x128xf32, #tpu.memory_space<vmem>>, vector<1x128xf32>
    %68 = vector.broadcast %67 : vector<1x128xf32> to vector<8x128xf32>
    %69 = arith.addf %66, %68 : vector<8x128xf32>
    %cst_37 = arith.constant 0.000000e+00 : f32
    %70 = vector.broadcast %cst_37 : f32 to vector<8x128xf32>
    %71 = arith.subf %70, %69 : vector<8x128xf32>
    %72 = math.exp %71 : vector<8x128xf32>
    %cst_38 = arith.constant 1.000000e+00 : f32
    %73 = vector.broadcast %cst_38 : f32 to vector<8x128xf32>
    %74 = arith.addf %73, %72 : vector<8x128xf32>
    %75 = tpu.reciprocal %74 {approx = true} : vector<8x128xf32> -> vector<8x128xf32>
    %76 = arith.mulf %69, %75 : vector<8x128xf32>
    %77 = arith.truncf %76 : vector<8x128xf32> to vector<8x128xbf16>
    %c4 = arith.constant 4 : index
    %c0_39 = arith.constant 0 : index
    %c0_40 = arith.constant 0 : index
    %78 = vector.load %arg3[%c4, %c0_39, %c0_40] : memref<5x128x128xbf16, #tpu.memory_space<vmem>>, vector<1x128x128xbf16>
    %79 = vector.shape_cast %78 : vector<1x128x128xbf16> to vector<128x128xbf16>
    %cst_41 = arith.constant dense<0.000000e+00> : vector<8x128xf32>
    %80 = tpu.matmul %77, %79, %cst_41 {dimension_numbers = #tpu.dot_dimension_numbers<[1], [0], [0], [1], [0, 0, 1, 1], [], []>} : vector<8x128xbf16>, vector<128x128xbf16>, vector<8x128xf32> -> vector<8x128xf32>
    %c4_42 = arith.constant 4 : index
    %c0_43 = arith.constant 0 : index
    %81 = vector.load %arg4[%c4_42, %c0_43] : memref<5x128xf32, #tpu.memory_space<vmem>>, vector<1x128xf32>
    %82 = vector.broadcast %81 : vector<1x128xf32> to vector<8x128xf32>
    %83 = arith.addf %80, %82 : vector<8x128xf32>
    %cst_44 = arith.constant 0.000000e+00 : f32
    %84 = vector.broadcast %cst_44 : f32 to vector<8x128xf32>
    %85 = arith.subf %84, %83 : vector<8x128xf32>
    %86 = math.exp %85 : vector<8x128xf32>
    %cst_45 = arith.constant 1.000000e+00 : f32
    %87 = vector.broadcast %cst_45 : f32 to vector<8x128xf32>
    %88 = arith.addf %87, %86 : vector<8x128xf32>
    %89 = tpu.reciprocal %88 {approx = true} : vector<8x128xf32> -> vector<8x128xf32>
    %90 = arith.mulf %83, %89 : vector<8x128xf32>
    %91 = arith.truncf %90 : vector<8x128xf32> to vector<8x128xbf16>
    %c0_46 = arith.constant 0 : index
    %c0_47 = arith.constant 0 : index
    %92 = vector.load %arg6[%c0_46, %c0_47] : memref<128x128xbf16, #tpu.memory_space<vmem>>, vector<128x128xbf16>
    %cst_48 = arith.constant dense<0.000000e+00> : vector<8x128xf32>
    %93 = tpu.matmul %91, %92, %cst_48 {dimension_numbers = #tpu.dot_dimension_numbers<[1], [0], [0], [1], [0, 0, 1, 1], [], []>} : vector<8x128xbf16>, vector<128x128xbf16>, vector<8x128xf32> -> vector<8x128xf32>
    %94 = vector.extract_strided_slice %1 {offsets = [0, 0], sizes = [8, 1], strides = [1, 1]} : vector<8x4xf32> to vector<8x1xf32>
    %c0_49 = arith.constant 0 : index
    %c0_50 = arith.constant 0 : index
    %95 = vector.load %arg7[%c0_49, %c0_50] : memref<3x128xf32, #tpu.memory_space<vmem>>, vector<1x128xf32>
    %96 = vector.broadcast %94 : vector<8x1xf32> to vector<8x128xf32>
    %97 = vector.broadcast %95 : vector<1x128xf32> to vector<8x128xf32>
    %98 = arith.mulf %96, %97 : vector<8x128xf32>
    %99 = arith.addf %93, %98 : vector<8x128xf32>
    %100 = vector.extract_strided_slice %1 {offsets = [0, 1], sizes = [8, 1], strides = [1, 1]} : vector<8x4xf32> to vector<8x1xf32>
    %c1_51 = arith.constant 1 : index
    %c0_52 = arith.constant 0 : index
    %101 = vector.load %arg7[%c1_51, %c0_52] : memref<3x128xf32, #tpu.memory_space<vmem>>, vector<1x128xf32>
    %102 = vector.broadcast %100 : vector<8x1xf32> to vector<8x128xf32>
    %103 = vector.broadcast %101 : vector<1x128xf32> to vector<8x128xf32>
    %104 = arith.mulf %102, %103 : vector<8x128xf32>
    %105 = arith.addf %99, %104 : vector<8x128xf32>
    %c2_53 = arith.constant 2 : index
    %c0_54 = arith.constant 0 : index
    %106 = vector.load %arg7[%c2_53, %c0_54] : memref<3x128xf32, #tpu.memory_space<vmem>>, vector<1x128xf32>
    %107 = vector.broadcast %106 : vector<1x128xf32> to vector<8x128xf32>
    %108 = arith.addf %105, %107 : vector<8x128xf32>
    %c0_55 = arith.constant 0 : index
    %c0_56 = arith.constant 0 : index
    %109 = vector.load %arg8[%c0_55, %c0_56] : memref<8x128xf32, #tpu.memory_space<vmem>>, vector<8x128xf32>
    tpu.vector_store %arg8[%c0_55, %c0_56], %108 {strides = array<i32>} : memref<8x128xf32, #tpu.memory_space<vmem>>, vector<8x128xf32>,
    return
  }
  func.func @transform_0(%arg0: i32) -> (i32, i32) {
    %c0_i32 = arith.constant 0 : i32
    %c0_i32_0 = arith.constant 0 : i32
    return %arg0, %c0_i32 : i32, i32
  }
  func.func @transform_1(%arg0: i32) -> (i32, i32) {
    %c0_i32 = arith.constant 0 : i32
    %c0_i32_0 = arith.constant 0 : i32
    return %arg0, %c0_i32 : i32, i32
  }
  func.func @transform_2(%arg0: i32) -> (i32, i32, i32) {
    %c0_i32 = arith.constant 0 : i32
    %c0_i32_0 = arith.constant 0 : i32
    %c0_i32_1 = arith.constant 0 : i32
    %c0_i32_2 = arith.constant 0 : i32
    return %c0_i32, %c0_i32_0, %c0_i32_1 : i32, i32, i32
  }
  func.func @transform_3(%arg0: i32) -> (i32, i32) {
    %c0_i32 = arith.constant 0 : i32
    %c0_i32_0 = arith.constant 0 : i32
    %c0_i32_1 = arith.constant 0 : i32
    return %c0_i32, %c0_i32_0 : i32, i32
  }
  func.func @transform_4(%arg0: i32) -> (i32, i32) {
    %c0_i32 = arith.constant 0 : i32
    %c0_i32_0 = arith.constant 0 : i32
    %c0_i32_1 = arith.constant 0 : i32
    return %c0_i32, %c0_i32_0 : i32, i32
  }
  func.func @transform_5(%arg0: i32) -> (i32, i32) {
    %c0_i32 = arith.constant 0 : i32
    %c0_i32_0 = arith.constant 0 : i32
    %c0_i32_1 = arith.constant 0 : i32
    return %c0_i32, %c0_i32_0 : i32, i32
  }
  func.func @transform_6(%arg0: i32) -> (i32, i32) {
    %c0_i32 = arith.constant 0 : i32
    %c0_i32_0 = arith.constant 0 : i32
    %c0_i32_1 = arith.constant 0 : i32
    return %c0_i32, %c0_i32_0 : i32, i32
  }
  func.func @transform_7(%arg0: i32) -> (i32, i32) {
    %c0_i32 = arith.constant 0 : i32
    %c0_i32_0 = arith.constant 0 : i32
    return %arg0, %c0_i32 : i32, i32
  }
}

</mosaic_0001>

<llo_original>
// kernel: g_gaussian_forward.1
$region0: #{g_gaussian_forward.1}
  #allocation0 [shape = 'u32[]', space=smem, size = 0x4, offset = 0x4, fixed_abs, tag = 'smem constant byte address 0x4 - core index']
  #allocation1 [shape = 'u32[72,128]{1,0:T(1,128)}', space=vmem, size = 0x9000, scoped, tag = 'internal scratch']
  %s0 = inlined_call_operand.vmem [shape: bf16[8,128], index: 0, kind: input, shape index: {}]
  %s1 = inlined_call_operand.vmem [shape: f32[8,4], index: 1, kind: input, shape index: {}]
  %s2 = inlined_call_operand.hbm [shape: bf16[5,128,128], index: 2, kind: input, shape index: {}]
  %s3 = inlined_call_operand.vmem [shape: f32[5,128], index: 3, kind: input, shape index: {}]
  %s4 = inlined_call_operand.vmem [shape: f32[4,128], index: 4, kind: input, shape index: {}]
  %s5 = inlined_call_operand.hbm [shape: bf16[128,128], index: 5, kind: input, shape index: {}]
  %s6 = inlined_call_operand.vmem [shape: f32[3,128], index: 6, kind: input, shape index: {}]
  %s7 = inlined_call_operand.vmem [shape: f32[8,128], index: 7, kind: output, shape index: {}]
  %s8 = sld [smem:[#allocation0]]
  $region46: #{g_gaussian_forward.1} parent=0
    _
  %s10 = ssub.s32 1, %s8
  %s11 = scalar_select 0, %s10, %s8
  $region1: #{g_gaussian_forward.1} parent=0
    #allocation2 [shape = 'u8[163840]{0}', space=vmem, size = 0x28000, scoped, tag = 'input window, operand 2, single buffered']
    #allocation3 [shape = 's32[1]{0}', space=sflag, size = 0x4, scoped, tag = 'scoped memory for g_gaussian_forward.1']
    #allocation4 [shape = 'u8[32768]{0}', space=vmem, size = 0x8000, scoped, tag = 'input window, operand 5, single buffered']
    #allocation5 [shape = 's32[1]{0}', space=sflag, size = 0x4, scoped, tag = 'scoped memory for g_gaussian_forward.1']
    %12 = vsyncpa [#allocation3], 0
    %13 = vsyncpa [#allocation5], 0
    // Predicated region
    $region2: #{g_gaussian_forward.1} parent=1 // pred_check
      _
    $region3: #{g_gaussian_forward.1} parent=1 // pred_check_branch
      %15 = sbr.rel (0) target = $region5
    $region4: #{g_gaussian_forward.1} parent=1 // pred_region
      _
    $region5: #{g_gaussian_forward.1} parent=1 // pred_fallthru
      _
    // Predicated region
    $region6: #{g_gaussian_forward.1} parent=1 // pred_check
      _
    $region7: #{g_gaussian_forward.1} parent=1 // pred_check_branch
      %17 = sbr.rel (0) target = $region9
    $region8: #{g_gaussian_forward.1} parent=1 // pred_region
      _
    $region9: #{g_gaussian_forward.1} parent=1 // pred_fallthru
      _
    // Predicated region
    $region10: #{g_gaussian_forward.1} parent=1 // pred_check
      _
    $region11: #{g_gaussian_forward.1} parent=1 // pred_check_branch
      %19 = sbr.rel (0) target = $region13
    $region12: #{g_gaussian_forward.1} parent=1 // pred_region
      %21 = vsyncadd [#allocation3], 0
      %s22 = sshll.u32 %s2, 4
      %s23 = int_to_ptr.hbm [resolvable:$true] %s22
      %s24 = sshll.u32 [#allocation2], 4
      %s25 = int_to_ptr.vmem [resolvable:$true] %s24
      %30 = dma.hbm_to_vmem [thread:$0]  %s23, 5120, %s25, [#allocation3], 64, 64, 4
    $region13: #{g_gaussian_forward.1} parent=1 // pred_fallthru
      _
    // Predicated region
    $region14: #{g_gaussian_forward.1} parent=1 // pred_check
      _
    $region15: #{g_gaussian_forward.1} parent=1 // pred_check_branch
      %32 = sbr.rel (0) target = $region17
    $region16: #{g_gaussian_forward.1} parent=1 // pred_region
      _
    $region17: #{g_gaussian_forward.1} parent=1 // pred_fallthru
      _
    // Predicated region
    $region18: #{g_gaussian_forward.1} parent=1 // pred_check
      _
    $region19: #{g_gaussian_forward.1} parent=1 // pred_check_branch
      %34 = sbr.rel (0) target = $region21
    $region20: #{g_gaussian_forward.1} parent=1 // pred_region
      _
    $region21: #{g_gaussian_forward.1} parent=1 // pred_fallthru
      _
    // Predicated region
    $region22: #{g_gaussian_forward.1} parent=1 // pred_check
      _
    $region23: #{g_gaussian_forward.1} parent=1 // pred_check_branch
      %36 = sbr.rel (0) target = $region25
    $region24: #{g_gaussian_forward.1} parent=1 // pred_region
      %38 = vsyncadd [#allocation5], 0
      %s39 = sshll.u32 %s5, 4
      %s40 = int_to_ptr.hbm [resolvable:$true] %s39
      %s41 = sshll.u32 [#allocation4], 4
      %s42 = int_to_ptr.vmem [resolvable:$true] %s41
      %47 = dma.hbm_to_vmem [thread:$0]  %s40, 1024, %s42, [#allocation5], 64, 64, 4
    $region25: #{g_gaussian_forward.1} parent=1 // pred_fallthru
      _
    // Predicated region
    $region26: #{g_gaussian_forward.1} parent=1 // pred_check
      _
    $region27: #{g_gaussian_forward.1} parent=1 // pred_check_branch
      %49 = sbr.rel (0) target = $region29
    $region28: #{g_gaussian_forward.1} parent=1 // pred_region
      _
    $region29: #{g_gaussian_forward.1} parent=1 // pred_fallthru
      _
    // Predicated region
    $region30: #{g_gaussian_forward.1} parent=1 // pred_check
      _
    $region31: #{g_gaussian_forward.1} parent=1 // pred_check_branch
      %51 = sbr.rel (0) target = $region33
    $region32: #{g_gaussian_forward.1} parent=1 // pred_region
      %53 = dma.done [#allocation3], 5120
    $region33: #{g_gaussian_forward.1} parent=1 // pred_fallthru
      _
    // Predicated region
    $region34: #{g_gaussian_forward.1} parent=1 // pred_check
      _
    $region35: #{g_gaussian_forward.1} parent=1 // pred_check_branch
      %55 = sbr.rel (0) target = $region37
    $region36: #{g_gaussian_forward.1} parent=1 // pred_region
      %57 = dma.done [#allocation5], 1024
    $region37: #{g_gaussian_forward.1} parent=1 // pred_fallthru
      _
    %v58 = vld [vmem:[%s0] sm:$0xf]
    %v59 = vld [vmem:[%s1] sm:$0xff]
    %v60 = vld [vmem:[#allocation2] sm:$0xf]
    %v61 = vld [vmem:[#allocation2 + $0x4] sm:$0xf]
    %v62 = vld [vmem:[#allocation2 + $0x8] sm:$0xf]
    %v63 = vld [vmem:[#allocation2 + $0xc] sm:$0xf]
    %v64 = vld [vmem:[#allocation2 + $0x10] sm:$0xf]
    %v65 = vld [vmem:[#allocation2 + $0x14] sm:$0xf]
    %v66 = vld [vmem:[#allocation2 + $0x18] sm:$0xf]
    %v67 = vld [vmem:[#allocation2 + $0x1c] sm:$0xf]
    %v68 = vld [vmem:[#allocation2 + $0x20] sm:$0xf]
    %v69 = vld [vmem:[#allocation2 + $0x24] sm:$0xf]
    %v70 = vld [vmem:[#allocation2 + $0x28] sm:$0xf]
    %v71 = vld [vmem:[#allocation2 + $0x2c] sm:$0xf]
    %v72 = vld [vmem:[#allocation2 + $0x30] sm:$0xf]
    %v73 = vld [vmem:[#allocation2 + $0x34] sm:$0xf]
    %v74 = vld [vmem:[#allocation2 + $0x38] sm:$0xf]
    %v75 = vld [vmem:[#allocation2 + $0x3c] sm:$0xf]
    %v76 = vld [vmem:[%s3] sm:$0x1]
    %v77 = vperm.slane %v76, 0
    %v94 = vunpack.c.l.b16 %v60
    %v95 = vunpack.c.l.b16 %v61
    %v96 = vunpack.c.l.b16 %v62
    %v97 = vunpack.c.l.b16 %v63
    %v98 = vunpack.c.l.b16 %v64
    %v99 = vunpack.c.l.b16 %v65
    %v100 = vunpack.c.l.b16 %v66
    %v101 = vunpack.c.l.b16 %v67
    %v102 = vunpack.c.l.b16 %v68
    %v103 = vunpack.c.l.b16 %v69
    %v104 = vunpack.c.l.b16 %v70
    %v105 = vunpack.c.l.b16 %v71
    %v106 = vunpack.c.l.b16 %v72
    %v107 = vunpack.c.l.b16 %v73
    %v108 = vunpack.c.l.b16 %v74
    %v109 = vunpack.c.l.b16 %v75
    %v110 = vpack.c.b16 %v95, %v94
    %v111 = vpack.c.b16 %v97, %v96
    %v112 = vpack.c.b16 %v99, %v98
    %v113 = vpack.c.b16 %v101, %v100
    %v114 = vpack.c.b16 %v103, %v102
    %v115 = vpack.c.b16 %v105, %v104
    %v116 = vpack.c.b16 %v107, %v106
    %v117 = vpack.c.b16 %v109, %v108
    %126 = vmatpush.bf16.msra.mxu0 %v117
    %127 = vmatpush.bf16.msra.mxu0 %v116
    %128 = vmatpush.bf16.msra.mxu0 %v115
    %129 = vmatpush.bf16.msra.mxu0 %v114
    %130 = vmatpush.bf16.msra.mxu0 %v113
    %131 = vmatpush.bf16.msra.mxu0 %v112
    %132 = vmatpush.bf16.msra.mxu0 %v111
    %133 = vmatpush.bf16.msra.mxu0 %v110
    %134 = vmatmul.bf16.gmra.mxu0 %v58
    %v135 = vpop.f32.mrf.mxu0
    %v136 = vadd.f32 %v77, %v135
    %v137 = vpop.f32.mrf.mxu0
    %138 = vdwg.mxu0
    %vm139 = vcmp.ge.f32.partialorder %v136, 0.0
    %v140 = vmul.f32 %v136, 0.2
    %v141 = vsel %vm139, %v136, %v140
    %v142 = vpack.c.bf16 %v141, %v141
    %s143 = scalar_lea.vmem [#allocation2], 64
    %v144 = vld [vmem:[%s143] sm:$0xf]
    %v145 = vld [vmem:[%s143 + $0x4] sm:$0xf]
    %v146 = vld [vmem:[%s143 + $0x8] sm:$0xf]
    %v147 = vld [vmem:[%s143 + $0xc] sm:$0xf]
    %v148 = vld [vmem:[%s143 + $0x10] sm:$0xf]
    %v149 = vld [vmem:[%s143 + $0x14] sm:$0xf]
    %v150 = vld [vmem:[%s143 + $0x18] sm:$0xf]
    %v151 = vld [vmem:[%s143 + $0x1c] sm:$0xf]
    %v152 = vld [vmem:[%s143 + $0x20] sm:$0xf]
    %v153 = vld [vmem:[%s143 + $0x24] sm:$0xf]
    %v154 = vld [vmem:[%s143 + $0x28] sm:$0xf]
    %v155 = vld [vmem:[%s143 + $0x2c] sm:$0xf]
    %v156 = vld [vmem:[%s143 + $0x30] sm:$0xf]
    %v157 = vld [vmem:[%s143 + $0x34] sm:$0xf]
    %v158 = vld [vmem:[%s143 + $0x38] sm:$0xf]
    %v159 = vld [vmem:[%s143 + $0x3c] sm:$0xf]
    %v160 = vld [vmem:[%s3 + $0x1] sm:$0x1]
    %v161 = vperm.slane %v160, 0
    %v178 = vunpack.c.l.b16 %v144
    %v179 = vunpack.c.l.b16 %v145
    %v180 = vunpack.c.l.b16 %v146
    %v181 = vunpack.c.l.b16 %v147
    %v182 = vunpack.c.l.b16 %v148
    %v183 = vunpack.c.l.b16 %v149
    %v184 = vunpack.c.l.b16 %v150
    %v185 = vunpack.c.l.b16 %v151
    %v186 = vunpack.c.l.b16 %v152
    %v187 = vunpack.c.l.b16 %v153
    %v188 = vunpack.c.l.b16 %v154
    %v189 = vunpack.c.l.b16 %v155
    %v190 = vunpack.c.l.b16 %v156
    %v191 = vunpack.c.l.b16 %v157
    %v192 = vunpack.c.l.b16 %v158
    %v193 = vunpack.c.l.b16 %v159
    %v194 = vpack.c.b16 %v179, %v178
    %v195 = vpack.c.b16 %v181, %v180
    %v196 = vpack.c.b16 %v183, %v182
    %v197 = vpack.c.b16 %v185, %v184
    %v198 = vpack.c.b16 %v187, %v186
    %v199 = vpack.c.b16 %v189, %v188
    %v200 = vpack.c.b16 %v191, %v190
    %v201 = vpack.c.b16 %v193, %v192
    %210 = vmatpush.bf16.msra.mxu0 %v201
    %211 = vmatpush.bf16.msra.mxu0 %v200
    %212 = vmatpush.bf16.msra.mxu0 %v199
    %213 = vmatpush.bf16.msra.mxu0 %v198
    %214 = vmatpush.bf16.msra.mxu0 %v197
    %215 = vmatpush.bf16.msra.mxu0 %v196
    %216 = vmatpush.bf16.msra.mxu0 %v195
    %217 = vmatpush.bf16.msra.mxu0 %v194
    %218 = vmatmul.bf16.gmra.mxu0 %v142
    %v219 = vpop.f32.mrf.mxu0
    %v220 = vadd.f32 %v161, %v219
    %v221 = vpop.f32.mrf.mxu0
    %222 = vdwg.mxu0
    %vm223 = vcmp.ge.f32.partialorder %v220, 0.0
    %v224 = vmul.f32 %v220, 0.2
    %v225 = vsel %vm223, %v220, %v224
    %v226 = vpack.c.bf16 %v225, %v225
    %s227 = scalar_lea.vmem [#allocation2], 128
    %v228 = vld [vmem:[%s227] sm:$0xf]
    %v229 = vld [vmem:[%s227 + $0x4] sm:$0xf]
    %v230 = vld [vmem:[%s227 + $0x8] sm:$0xf]
    %v231 = vld [vmem:[%s227 + $0xc] sm:$0xf]
    %v232 = vld [vmem:[%s227 + $0x10] sm:$0xf]
    %v233 = vld [vmem:[%s227 + $0x14] sm:$0xf]
    %v234 = vld [vmem:[%s227 + $0x18] sm:$0xf]
    %v235 = vld [vmem:[%s227 + $0x1c] sm:$0xf]
    %v236 = vld [vmem:[%s227 + $0x20] sm:$0xf]
    %v237 = vld [vmem:[%s227 + $0x24] sm:$0xf]
    %v238 = vld [vmem:[%s227 + $0x28] sm:$0xf]
    %v239 = vld [vmem:[%s227 + $0x2c] sm:$0xf]
    %v240 = vld [vmem:[%s227 + $0x30] sm:$0xf]
    %v241 = vld [vmem:[%s227 + $0x34] sm:$0xf]
    %v242 = vld [vmem:[%s227 + $0x38] sm:$0xf]
    %v243 = vld [vmem:[%s227 + $0x3c] sm:$0xf]
    %v244 = vld [vmem:[%s3 + $0x2] sm:$0x1]
    %v245 = vperm.slane %v244, 0
    %v262 = vunpack.c.l.b16 %v228
    %v263 = vunpack.c.l.b16 %v229
    %v264 = vunpack.c.l.b16 %v230
    %v265 = vunpack.c.l.b16 %v231
    %v266 = vunpack.c.l.b16 %v232
    %v267 = vunpack.c.l.b16 %v233
    %v268 = vunpack.c.l.b16 %v234
    %v269 = vunpack.c.l.b16 %v235
    %v270 = vunpack.c.l.b16 %v236
    %v271 = vunpack.c.l.b16 %v237
    %v272 = vunpack.c.l.b16 %v238
    %v273 = vunpack.c.l.b16 %v239
    %v274 = vunpack.c.l.b16 %v240
    %v275 = vunpack.c.l.b16 %v241
    %v276 = vunpack.c.l.b16 %v242
    %v277 = vunpack.c.l.b16 %v243
    %v278 = vpack.c.b16 %v263, %v262
    %v279 = vpack.c.b16 %v265, %v264
    %v280 = vpack.c.b16 %v267, %v266
    %v281 = vpack.c.b16 %v269, %v268
    %v282 = vpack.c.b16 %v271, %v270
    %v283 = vpack.c.b16 %v273, %v272
    %v284 = vpack.c.b16 %v275, %v274
    %v285 = vpack.c.b16 %v277, %v276
    %294 = vmatpush.bf16.msra.mxu0 %v285
    %295 = vmatpush.bf16.msra.mxu0 %v284
    %296 = vmatpush.bf16.msra.mxu0 %v283
    %297 = vmatpush.bf16.msra.mxu0 %v282
    %298 = vmatpush.bf16.msra.mxu0 %v281
    %299 = vmatpush.bf16.msra.mxu0 %v280
    %300 = vmatpush.bf16.msra.mxu0 %v279
    %301 = vmatpush.bf16.msra.mxu0 %v278
    %302 = vmatmul.bf16.gmra.mxu0 %v226
    %v303 = vpop.f32.mrf.mxu0
    %v304 = vadd.f32 %v245, %v303
    %v305 = vpop.f32.mrf.mxu0
    %306 = vdwg.mxu0
    %v307 = vld [vmem:[%s4] sm:$0x1]
    %309 = vset.pattern.permute.xlu0 0
    %310 = vperm.xlu0 %309, %v59
    %v311 = vpop.permute.xlu0 %310
    %v313 = vperm.slane %v307, 0
    %v314 = vmul.f32 %v311, %v313
    %v315 = vadd.f32 %v304, %v314
    %v316 = vld [vmem:[%s4 + $0x1] sm:$0x1]
    %317 = vset.pattern.permute.xlu0 1
    %318 = vperm.xlu0 %317, %v59
    %v319 = vpop.permute.xlu0 %318
    %v321 = vperm.slane %v316, 0
    %v322 = vmul.f32 %v319, %v321
    %v323 = vadd.f32 %v315, %v322
    %v324 = vld [vmem:[%s4 + $0x2] sm:$0x1]
    %325 = vset.pattern.permute.xlu0 2
    %326 = vperm.xlu0 %325, %v59
    %v327 = vpop.permute.xlu0 %326
    %v329 = vperm.slane %v324, 0
    %v330 = vmul.f32 %v327, %v329
    %v331 = vadd.f32 %v323, %v330
    %v332 = vld [vmem:[%s4 + $0x3] sm:$0x1]
    %333 = vset.pattern.permute.xlu0 3
    %334 = vperm.xlu0 %333, %v59
    %v335 = vpop.permute.xlu0 %334
    %v337 = vperm.slane %v332, 0
    %v338 = vmul.f32 %v335, %v337
    %v339 = vadd.f32 %v331, %v338
    %v340 = vsub.f32 0.0, %v339
    %v341 = vmul.f32 %v340, 1.442695
    %v342 = vpow.pop %v341
    %v343 = vadd.f32 %v342, 1.0
    %v344 = vrcp.pop %v343
    %v345 = vmul.f32 %v339, %v344
    %v346 = vpack.c.bf16 %v345, %v345
    %s347 = scalar_lea.vmem [#allocation2], 192
    %v348 = vld [vmem:[%s347] sm:$0xf]
    %v349 = vld [vmem:[%s347 + $0x4] sm:$0xf]
    %v350 = vld [vmem:[%s347 + $0x8] sm:$0xf]
    %v351 = vld [vmem:[%s347 + $0xc] sm:$0xf]
    %v352 = vld [vmem:[%s347 + $0x10] sm:$0xf]
    %v353 = vld [vmem:[%s347 + $0x14] sm:$0xf]
    %v354 = vld [vmem:[%s347 + $0x18] sm:$0xf]
    %v355 = vld [vmem:[%s347 + $0x1c] sm:$0xf]
    %v356 = vld [vmem:[%s347 + $0x20] sm:$0xf]
    %v357 = vld [vmem:[%s347 + $0x24] sm:$0xf]
    %v358 = vld [vmem:[%s347 + $0x28] sm:$0xf]
    %v359 = vld [vmem:[%s347 + $0x2c] sm:$0xf]
    %v360 = vld [vmem:[%s347 + $0x30] sm:$0xf]
    %v361 = vld [vmem:[%s347 + $0x34] sm:$0xf]
    %v362 = vld [vmem:[%s347 + $0x38] sm:$0xf]
    %v363 = vld [vmem:[%s347 + $0x3c] sm:$0xf]
    %v364 = vld [vmem:[%s3 + $0x3] sm:$0x1]
    %v365 = vperm.slane %v364, 0
    %v382 = vunpack.c.l.b16 %v348
    %v383 = vunpack.c.l.b16 %v349
    %v384 = vunpack.c.l.b16 %v350
    %v385 = vunpack.c.l.b16 %v351
    %v386 = vunpack.c.l.b16 %v352
    %v387 = vunpack.c.l.b16 %v353
    %v388 = vunpack.c.l.b16 %v354
    %v389 = vunpack.c.l.b16 %v355
    %v390 = vunpack.c.l.b16 %v356
    %v391 = vunpack.c.l.b16 %v357
    %v392 = vunpack.c.l.b16 %v358
    %v393 = vunpack.c.l.b16 %v359
    %v394 = vunpack.c.l.b16 %v360
    %v395 = vunpack.c.l.b16 %v361
    %v396 = vunpack.c.l.b16 %v362
    %v397 = vunpack.c.l.b16 %v363
    %v398 = vpack.c.b16 %v383, %v382
    %v399 = vpack.c.b16 %v385, %v384
    %v400 = vpack.c.b16 %v387, %v386
    %v401 = vpack.c.b16 %v389, %v388
    %v402 = vpack.c.b16 %v391, %v390
    %v403 = vpack.c.b16 %v393, %v392
    %v404 = vpack.c.b16 %v395, %v394
    %v405 = vpack.c.b16 %v397, %v396
    %414 = vmatpush.bf16.msra.mxu0 %v405
    %415 = vmatpush.bf16.msra.mxu0 %v404
    %416 = vmatpush.bf16.msra.mxu0 %v403
    %417 = vmatpush.bf16.msra.mxu0 %v402
    %418 = vmatpush.bf16.msra.mxu0 %v401
    %419 = vmatpush.bf16.msra.mxu0 %v400
    %420 = vmatpush.bf16.msra.mxu0 %v399
    %421 = vmatpush.bf16.msra.mxu0 %v398
    %422 = vmatmul.bf16.gmra.mxu0 %v346
    %v423 = vpop.f32.mrf.mxu0
    %v424 = vadd.f32 %v365, %v423
    %v425 = vpop.f32.mrf.mxu0
    %426 = vdwg.mxu0
    %v427 = vsub.f32 0.0, %v424
    %v428 = vmul.f32 %v427, 1.442695
    %v429 = vpow.pop %v428
    %v430 = vadd.f32 %v429, 1.0
    %v431 = vrcp.pop %v430
    %v432 = vmul.f32 %v424, %v431
    %v433 = vpack.c.bf16 %v432, %v432
    %s434 = scalar_lea.vmem [#allocation2], 256
    %v435 = vld [vmem:[%s434] sm:$0xf]
    %v436 = vld [vmem:[%s434 + $0x4] sm:$0xf]
    %v437 = vld [vmem:[%s434 + $0x8] sm:$0xf]
    %v438 = vld [vmem:[%s434 + $0xc] sm:$0xf]
    %v439 = vld [vmem:[%s434 + $0x10] sm:$0xf]
    %v440 = vld [vmem:[%s434 + $0x14] sm:$0xf]
    %v441 = vld [vmem:[%s434 + $0x18] sm:$0xf]
    %v442 = vld [vmem:[%s434 + $0x1c] sm:$0xf]
    %v443 = vld [vmem:[%s434 + $0x20] sm:$0xf]
    %v444 = vld [vmem:[%s434 + $0x24] sm:$0xf]
    %v445 = vld [vmem:[%s434 + $0x28] sm:$0xf]
    %v446 = vld [vmem:[%s434 + $0x2c] sm:$0xf]
    %v447 = vld [vmem:[%s434 + $0x30] sm:$0xf]
    %v448 = vld [vmem:[%s434 + $0x34] sm:$0xf]
    %v449 = vld [vmem:[%s434 + $0x38] sm:$0xf]
    %v450 = vld [vmem:[%s434 + $0x3c] sm:$0xf]
    %v451 = vld [vmem:[%s3 + $0x4] sm:$0x1]
    %v452 = vperm.slane %v451, 0
    %v469 = vunpack.c.l.b16 %v435
    %v470 = vunpack.c.l.b16 %v436
    %v471 = vunpack.c.l.b16 %v437
    %v472 = vunpack.c.l.b16 %v438
    %v473 = vunpack.c.l.b16 %v439
    %v474 = vunpack.c.l.b16 %v440
    %v475 = vunpack.c.l.b16 %v441
    %v476 = vunpack.c.l.b16 %v442
    %v477 = vunpack.c.l.b16 %v443
    %v478 = vunpack.c.l.b16 %v444
    %v479 = vunpack.c.l.b16 %v445
    %v480 = vunpack.c.l.b16 %v446
    %v481 = vunpack.c.l.b16 %v447
    %v482 = vunpack.c.l.b16 %v448
    %v483 = vunpack.c.l.b16 %v449
    %v484 = vunpack.c.l.b16 %v450
    %v485 = vpack.c.b16 %v470, %v469
    %v486 = vpack.c.b16 %v472, %v471
    %v487 = vpack.c.b16 %v474, %v473
    %v488 = vpack.c.b16 %v476, %v475
    %v489 = vpack.c.b16 %v478, %v477
    %v490 = vpack.c.b16 %v480, %v479
    %v491 = vpack.c.b16 %v482, %v481
    %v492 = vpack.c.b16 %v484, %v483
    %501 = vmatpush.bf16.msra.mxu0 %v492
    %502 = vmatpush.bf16.msra.mxu0 %v491
    %503 = vmatpush.bf16.msra.mxu0 %v490
    %504 = vmatpush.bf16.msra.mxu0 %v489
    %505 = vmatpush.bf16.msra.mxu0 %v488
    %506 = vmatpush.bf16.msra.mxu0 %v487
    %507 = vmatpush.bf16.msra.mxu0 %v486
    %508 = vmatpush.bf16.msra.mxu0 %v485
    %509 = vmatmul.bf16.gmra.mxu0 %v433
    %v510 = vpop.f32.mrf.mxu0
    %v511 = vadd.f32 %v452, %v510
    %v512 = vpop.f32.mrf.mxu0
    %513 = vdwg.mxu0
    %v514 = vsub.f32 0.0, %v511
    %v515 = vmul.f32 %v514, 1.442695
    %v516 = vpow.pop %v515
    %v517 = vadd.f32 %v516, 1.0
    %v518 = vrcp.pop %v517
    %v519 = vmul.f32 %v511, %v518
    %v520 = vpack.c.bf16 %v519, %v519
    %v521 = vld [vmem:[#allocation4] sm:$0xf]
    %v522 = vld [vmem:[#allocation4 + $0x4] sm:$0xf]
    %v523 = vld [vmem:[#allocation4 + $0x8] sm:$0xf]
    %v524 = vld [vmem:[#allocation4 + $0xc] sm:$0xf]
    %v525 = vld [vmem:[#allocation4 + $0x10] sm:$0xf]
    %v526 = vld [vmem:[#allocation4 + $0x14] sm:$0xf]
    %v527 = vld [vmem:[#allocation4 + $0x18] sm:$0xf]
    %v528 = vld [vmem:[#allocation4 + $0x1c] sm:$0xf]
    %v529 = vld [vmem:[#allocation4 + $0x20] sm:$0xf]
    %v530 = vld [vmem:[#allocation4 + $0x24] sm:$0xf]
    %v531 = vld [vmem:[#allocation4 + $0x28] sm:$0xf]
    %v532 = vld [vmem:[#allocation4 + $0x2c] sm:$0xf]
    %v533 = vld [vmem:[#allocation4 + $0x30] sm:$0xf]
    %v534 = vld [vmem:[#allocation4 + $0x34] sm:$0xf]
    %v535 = vld [vmem:[#allocation4 + $0x38] sm:$0xf]
    %v536 = vld [vmem:[#allocation4 + $0x3c] sm:$0xf]
    %v537 = vld [vmem:[%s6] sm:$0x1]
    %v538 = vperm.slane %v537, 0
    %v539 = vmul.f32 %v311, %v538
    %v556 = vunpack.c.l.b16 %v521
    %v557 = vunpack.c.l.b16 %v522
    %v558 = vunpack.c.l.b16 %v523
    %v559 = vunpack.c.l.b16 %v524
    %v560 = vunpack.c.l.b16 %v525
    %v561 = vunpack.c.l.b16 %v526
    %v562 = vunpack.c.l.b16 %v527
    %v563 = vunpack.c.l.b16 %v528
    %v564 = vunpack.c.l.b16 %v529
    %v565 = vunpack.c.l.b16 %v530
    %v566 = vunpack.c.l.b16 %v531
    %v567 = vunpack.c.l.b16 %v532
    %v568 = vunpack.c.l.b16 %v533
    %v569 = vunpack.c.l.b16 %v534
    %v570 = vunpack.c.l.b16 %v535
    %v571 = vunpack.c.l.b16 %v536
    %v572 = vpack.c.b16 %v557, %v556
    %v573 = vpack.c.b16 %v559, %v558
    %v574 = vpack.c.b16 %v561, %v560
    %v575 = vpack.c.b16 %v563, %v562
    %v576 = vpack.c.b16 %v565, %v564
    %v577 = vpack.c.b16 %v567, %v566
    %v578 = vpack.c.b16 %v569, %v568
    %v579 = vpack.c.b16 %v571, %v570
    %588 = vmatpush.bf16.msra.mxu0 %v579
    %589 = vmatpush.bf16.msra.mxu0 %v578
    %590 = vmatpush.bf16.msra.mxu0 %v577
    %591 = vmatpush.bf16.msra.mxu0 %v576
    %592 = vmatpush.bf16.msra.mxu0 %v575
    %593 = vmatpush.bf16.msra.mxu0 %v574
    %594 = vmatpush.bf16.msra.mxu0 %v573
    %595 = vmatpush.bf16.msra.mxu0 %v572
    %596 = vmatmul.bf16.gmra.mxu0 %v520
    %v597 = vpop.f32.mrf.mxu0
    %v598 = vadd.f32 %v539, %v597
    %v599 = vpop.f32.mrf.mxu0
    %600 = vdwg.mxu0
    %v601 = vld [vmem:[%s6 + $0x1] sm:$0x1]
    %v602 = vperm.slane %v601, 0
    %v603 = vmul.f32 %v319, %v602
    %v604 = vadd.f32 %v598, %v603
    %v605 = vld [vmem:[%s6 + $0x2] sm:$0x1]
    %v606 = vperm.slane %v605, 0
    %v607 = vadd.f32 %v604, %v606
    %608 = vst [vmem:[%s7] sm:$0xff] %v607
    // Predicated region
    $region38: #{g_gaussian_forward.1} parent=1 // pred_check
      _
    $region39: #{g_gaussian_forward.1} parent=1 // pred_check_branch
      %610 = sbr.rel (0) target = $region41
    $region40: #{g_gaussian_forward.1} parent=1 // pred_region
      _
    $region41: #{g_gaussian_forward.1} parent=1 // pred_fallthru
      _
    // Predicated region
    $region42: #{g_gaussian_forward.1} parent=1 // pred_check
      _
    $region43: #{g_gaussian_forward.1} parent=1 // pred_check_branch
      %612 = sbr.rel (0) target = $region45
    $region44: #{g_gaussian_forward.1} parent=1 // pred_region
      _
    $region45: #{g_gaussian_forward.1} parent=1 // pred_fallthru
      _
    %613 = vsyncpa [#allocation3], 1
    %614 = vsyncpa [#allocation5], 1

</llo_original>
